<compile_context>
chip_gen: v7x
topology: tpu7x:2x2x1
jax: 0.10.0
libtpu: 0.0.40
codegen_flags: <defaults>
</compile_context>

<pallas_src>
import jax
import jax.numpy as jnp
from jax.experimental import pallas as pl
from jax.experimental.pallas import tpu as pltpu

BN_EPS = 1e-5
LANE = 128
# Conservative scoped-VMEM budget for the grid-less design (v7x default scoped
# limit is 32 MiB; leave headroom for spills / internal scratch).
_VMEM_BUDGET_BYTES = 24 << 20


def _actor_kernel(x_ref, w1_ref, b1_ref, w2_ref, b2_ref, o_ref):
    x = x_ref[...]                                      # (B, S) f32
    inv_b = 1.0 / x.shape[0]

    # --- BatchNorm1d statistics, single pass (sum + sum of squares) ---
    s1 = jnp.sum(x, axis=0, keepdims=True)              # (1, S) sublane reduce
    s2 = jnp.sum(x * x, axis=0, keepdims=True)
    mean = s1 * inv_b
    var = jnp.maximum(s2 * inv_b - mean * mean, 0.0)     # biased batch var
    x_bn = (x - mean) * jax.lax.rsqrt(var + BN_EPS)      # rsqrt -> EUP
    # (gamma/beta already folded into w1/b1 by prepare_params)

    # --- fc1 + ReLU (MXU matmul, f32 accumulation) ---
    h = jnp.dot(x_bn, w1_ref[...], preferred_element_type=jnp.float32)
    h = jnp.maximum(h + b1_ref[...], 0.0)                # (B, 256)

    # --- fc2 + tanh (lane-dense padded N = 128, full unmasked vst) ---
    y = jnp.dot(h, w2_ref[...], preferred_element_type=jnp.float32)
    o_ref[...] = jnp.tanh(y + b2_ref[...])               # (B, A_pad)


def prepare_params(params):
    """One-time parameter prep: fold BN affine into fc1, pre-pad fc2.

    Input `params` is the torch-layout dict from init_params().  Returns the
    kernel-ready dict.  Do this once at parameter load, NOT per call.
    """
    gamma = params["gamma"].reshape(-1)                  # (S,)
    beta = params["beta"].reshape(1, -1)                 # (1, S)
    w1 = params["w1"]                                    # (S, H)
    b1 = params["b1"]                                    # (1, H)
    w2 = params["w2"]                                    # (H, A)
    b2 = params["b2"]                                    # (1, A)
    A = w2.shape[1]
    A_pad = max(LANE, pl.cdiv(A, LANE) * LANE)

    return {
        "w1f": gamma[:, None] * w1,                      # fold gamma
        "b1f": beta @ w1 + b1,                           # fold beta
        "w2p": jnp.pad(w2, ((0, 0), (0, A_pad - A))),    # lane-dense slab
        "b2p": jnp.pad(b2, ((0, 0), (0, A_pad - A))),
        "action_size": A,
    }


def actor_forward(state, kparams, *, return_padded=False):
    """state: (B, S) f32. kparams: output of prepare_params()."""
    B, S = state.shape
    H = kparams["w1f"].shape[1]
    A_pad = kparams["w2p"].shape[1]
    A = kparams["action_size"]

    # Whole-array VMEM residency: state, h, padded output, and both weight
    # matrices must all fit scoped VMEM (tightest on v7x).
    resident_bytes = 4 * (B * S + S * H + H + H * A_pad + A_pad
                          + B * H + B * A_pad)
    if resident_bytes > _VMEM_BUDGET_BYTES:
        raise ValueError(
            f"actor_forward: ~{resident_bytes} resident bytes exceeds the "
            f"grid-less VMEM budget; tile the batch (with two-pass BN).")

    vmem = pl.BlockSpec(memory_space=pltpu.MemorySpace.VMEM)
    bytes_accessed = 4 * (state.size + kparams["w1f"].size
                          + kparams["b1f"].size + kparams["w2p"].size
                          + kparams["b2p"].size + B * A_pad)

    out_padded = pl.pallas_call(
        _actor_kernel,
        out_shape=jax.ShapeDtypeStruct((B, A_pad), jnp.float32),
        in_specs=[vmem, vmem, vmem, vmem, vmem],
        out_specs=vmem,
        cost_estimate=pl.CostEstimate(
            flops=2 * B * (S * H + H * A_pad) + 6 * B * S,
            transcendentals=B * A_pad + S,               # tanh + rsqrt
            bytes_accessed=bytes_accessed),
    )(state, kparams["w1f"], kparams["b1f"], kparams["w2p"], kparams["b2p"])

    if return_padded:
        return out_padded          # (B, A_pad); lanes A.. are exactly 0
    return out_padded[:, :A]       # (B, A)


def init_params(key, state_size, action_size, hidden=256):
    """Deterministic synthetic parameters (shapes match the torch module)."""
    k1, k2, k3, k4 = jax.random.split(key, 4)
    # torch nn.Linear default init: U(-1/sqrt(fan_in), 1/sqrt(fan_in))
    lim1 = 1.0 / jnp.sqrt(jnp.float32(state_size))
    lim2 = 1.0 / jnp.sqrt(jnp.float32(hidden))
    return {
        # BatchNorm1d affine params (default init: gamma=1, beta=0) -- kept
        # general here; prepare_params() folds arbitrary gamma/beta into fc1.
        "gamma": jnp.ones((1, state_size), jnp.float32),
        "beta": jnp.zeros((1, state_size), jnp.float32),
        "w1": jax.random.uniform(k1, (state_size, hidden), jnp.float32,
                                 -lim1, lim1),
        "b1": jax.random.uniform(k2, (1, hidden), jnp.float32, -lim1, lim1),
        "w2": jax.random.uniform(k3, (hidden, action_size), jnp.float32,
                                 -lim2, lim2),
        "b2": jax.random.uniform(k4, (1, action_size), jnp.float32,
                                 -lim2, lim2),
    }


def _reference(state, p):
    """Pure-JAX reference of the torch forward (training-mode BN)."""
    mean = jnp.mean(state, axis=0, keepdims=True)
    var = jnp.mean((state - mean) ** 2, axis=0, keepdims=True)
    x = (state - mean) / jnp.sqrt(var + BN_EPS) * p["gamma"] + p["beta"]
    h = jnp.maximum(x @ p["w1"] + p["b1"], 0.0)
    return jnp.tanh(h @ p["w2"] + p["b2"])


if __name__ == "__main__":
    key = jax.random.PRNGKey(0)
    kx, kp = jax.random.split(key)

    batch, state_size, action_size = 8, 24, 4   # small Tennis-like shapes
    state = jax.random.normal(kx, (batch, state_size), jnp.float32)
    params = init_params(kp, state_size, action_size)
    kparams = prepare_params(params)            # one-time fold + pad

    out = actor_forward(state, kparams)
    out = jax.block_until_ready(out)

    ref = _reference(state, params)
    assert out.shape == (batch, action_size)
    assert jnp.allclose(out, ref, atol=3e-5, rtol=1e-4), "mismatch vs reference"

    # Padded-slab path: lanes beyond action_size must be exactly tanh(0)=0.
    out_pad = jax.block_until_ready(actor_forward(state, kparams,
                                                  return_padded=True))
    assert out_pad.shape == (batch, LANE)
    assert jnp.allclose(out_pad[:, :action_size], ref, atol=3e-5, rtol=1e-4)
    assert jnp.all(out_pad[:, action_size:] == 0.0)

    print("KERNEL_OK")
</pallas_src>

<mosaic_0001>
module attributes {stable_mosaic.version = 11 : i64} {
  func.func @_actor_kernel(%arg0: memref<8x24xf32, #tpu.memory_space<vmem>>, %arg1: memref<24x256xf32, #tpu.memory_space<vmem>>, %arg2: memref<1x256xf32, #tpu.memory_space<vmem>>, %arg3: memref<256x128xf32, #tpu.memory_space<vmem>>, %arg4: memref<1x128xf32, #tpu.memory_space<vmem>>, %arg5: memref<8x128xf32, #tpu.memory_space<vmem>>) attributes {dimension_semantics = [], scalar_prefetch = 0 : i64, scratch_operands = 0 : i64, tpu.core_type = #tpu.core_type<tc>} {
    %c0 = arith.constant 0 : index
    %c0_0 = arith.constant 0 : index
    %0 = vector.load %arg0[%c0, %c0_0] : memref<8x24xf32, #tpu.memory_space<vmem>>, vector<8x24xf32>
    %cst = arith.constant dense<0.000000e+00> : vector<24xf32>
    %1 = vector.multi_reduction <add>, %0, %cst [0] : vector<8x24xf32> to vector<24xf32>
    %2 = vector.shape_cast %1 : vector<24xf32> to vector<1x24xf32>
    %3 = arith.mulf %0, %0 : vector<8x24xf32>
    %cst_1 = arith.constant dense<0.000000e+00> : vector<24xf32>
    %4 = vector.multi_reduction <add>, %3, %cst_1 [0] : vector<8x24xf32> to vector<24xf32>
    %5 = vector.shape_cast %4 : vector<24xf32> to vector<1x24xf32>
    %cst_2 = arith.constant 1.250000e-01 : f32
    %6 = vector.broadcast %cst_2 : f32 to vector<1x24xf32>
    %7 = arith.mulf %2, %6 : vector<1x24xf32>
    %cst_3 = arith.constant 1.250000e-01 : f32
    %8 = vector.broadcast %cst_3 : f32 to vector<1x24xf32>
    %9 = arith.mulf %5, %8 : vector<1x24xf32>
    %10 = arith.mulf %7, %7 : vector<1x24xf32>
    %11 = arith.subf %9, %10 : vector<1x24xf32>
    %cst_4 = arith.constant 0.000000e+00 : f32
    %12 = vector.broadcast %cst_4 : f32 to vector<1x24xf32>
    %13 = arith.maximumf %11, %12 : vector<1x24xf32>
    %14 = vector.broadcast %7 : vector<1x24xf32> to vector<8x24xf32>
    %15 = arith.subf %0, %14 : vector<8x24xf32>
    %cst_5 = arith.constant 9.99999974E-6 : f32
    %16 = vector.broadcast %cst_5 : f32 to vector<1x24xf32>
    %17 = arith.addf %13, %16 : vector<1x24xf32>
    %18 = math.rsqrt %17 : vector<1x24xf32>
    %19 = vector.broadcast %18 : vector<1x24xf32> to vector<8x24xf32>
    %20 = arith.mulf %15, %19 : vector<8x24xf32>
    %c0_6 = arith.constant 0 : index
    %c0_7 = arith.constant 0 : index
    %21 = vector.load %arg1[%c0_6, %c0_7] : memref<24x256xf32, #tpu.memory_space<vmem>>, vector<24x256xf32>
    %cst_8 = arith.constant dense<0.000000e+00> : vector<8x256xf32>
    %22 = tpu.matmul %20, %21, %cst_8 {dimension_numbers = #tpu.dot_dimension_numbers<[1], [0], [0], [1], [0, 0, 1, 1], [], []>} : vector<8x24xf32>, vector<24x256xf32>, vector<8x256xf32> -> vector<8x256xf32>
    %c0_9 = arith.constant 0 : index
    %c0_10 = arith.constant 0 : index
    %23 = vector.load %arg2[%c0_9, %c0_10] : memref<1x256xf32, #tpu.memory_space<vmem>>, vector<1x256xf32>
    %24 = vector.broadcast %23 : vector<1x256xf32> to vector<8x256xf32>
    %25 = arith.addf %22, %24 : vector<8x256xf32>
    %cst_11 = arith.constant 0.000000e+00 : f32
    %26 = vector.broadcast %cst_11 : f32 to vector<8x256xf32>
    %27 = arith.maximumf %25, %26 : vector<8x256xf32>
    %c0_12 = arith.constant 0 : index
    %c0_13 = arith.constant 0 : index
    %28 = vector.load %arg3[%c0_12, %c0_13] : memref<256x128xf32, #tpu.memory_space<vmem>>, vector<256x128xf32>
    %cst_14 = arith.constant dense<0.000000e+00> : vector<8x128xf32>
    %29 = tpu.matmul %27, %28, %cst_14 {dimension_numbers = #tpu.dot_dimension_numbers<[1], [0], [0], [1], [0, 0, 1, 1], [], []>} : vector<8x256xf32>, vector<256x128xf32>, vector<8x128xf32> -> vector<8x128xf32>
    %c0_15 = arith.constant 0 : index
    %c0_16 = arith.constant 0 : index
    %30 = vector.load %arg4[%c0_15, %c0_16] : memref<1x128xf32, #tpu.memory_space<vmem>>, vector<1x128xf32>
    %31 = vector.broadcast %30 : vector<1x128xf32> to vector<8x128xf32>
    %32 = arith.addf %29, %31 : vector<8x128xf32>
    %33 = math.tanh %32 : vector<8x128xf32>
    %c0_17 = arith.constant 0 : index
    %c0_18 = arith.constant 0 : index
    %34 = vector.load %arg5[%c0_17, %c0_18] : memref<8x128xf32, #tpu.memory_space<vmem>>, vector<8x128xf32>
    tpu.vector_store %arg5[%c0_17, %c0_18], %33 {strides = array<i32>} : memref<8x128xf32, #tpu.memory_space<vmem>>, vector<8x128xf32>,
    return
  }
}

</mosaic_0001>

<llo_original>
// kernel: tpu_custom_call.1
$region0: #{tpu_custom_call.1}
  #allocation0 [shape = 'u32[]', space=smem, size = 0x4, offset = 0x4, fixed_abs, tag = 'smem constant byte address 0x4 - core index']
  #allocation1 [shape = 'u32[144,128]{1,0:T(1,128)}', space=vmem, size = 0x12000, scoped, tag = 'internal scratch']
  %s0 = inlined_call_operand.hbm [shape: f32[8,24], index: 0, kind: input, shape index: {}]
  %s1 = inlined_call_operand.hbm [shape: f32[24,256], index: 1, kind: input, shape index: {}]
  %s2 = inlined_call_operand.vmem [shape: f32[1,256], index: 2, kind: input, shape index: {}]
  %s3 = inlined_call_operand.hbm [shape: f32[256,128], index: 3, kind: input, shape index: {}]
  %s4 = inlined_call_operand.vmem [shape: f32[1,128], index: 4, kind: input, shape index: {}]
  %s5 = inlined_call_operand.hbm [shape: f32[8,128], index: 5, kind: output, shape index: {}]
  %s6 = sld [smem:[#allocation0]]
  $region42: #{tpu_custom_call.1} parent=0
    _
  %s8 = ssub.s32 1, %s6
  %s9 = scalar_select 0, %s8, %s6
  $region1: #{tpu_custom_call.1} parent=0
    #allocation2 [shape = 'u8[4096]{0}', space=vmem, size = 0x1000, scoped, tag = 'input window, operand 0, single buffered']
    #allocation3 [shape = 's32[1]{0}', space=sflag, size = 0x4, scoped, tag = 'scoped memory for tpu_custom_call.1']
    #allocation4 [shape = 's32[1]{0}', space=sflag, size = 0x4, scoped, tag = 'scoped memory for tpu_custom_call.1']
    #allocation5 [shape = 'u8[24576]{0}', space=vmem, size = 0x6000, scoped, tag = 'input window, operand 1, single buffered']
    #allocation6 [shape = 's32[1]{0}', space=sflag, size = 0x4, scoped, tag = 'scoped memory for tpu_custom_call.1']
    #allocation7 [shape = 'u8[131072]{0}', space=vmem, size = 0x20000, scoped, tag = 'input window, operand 3, single buffered']
    #allocation8 [shape = 'u8[4096]{0}', space=vmem, size = 0x1000, scoped, tag = 'output window, operand 0, single buffered']
    %10 = vsyncpa [#allocation3], 0
    %11 = vsyncpa [#allocation6], 0
    %12 = vsyncpa [#allocation4], 0
    // Predicated region
    $region2: #{tpu_custom_call.1} parent=1 // pred_check
      _
    $region3: #{tpu_custom_call.1} parent=1 // pred_check_branch
      %14 = sbr.rel (0) target = $region5
    $region4: #{tpu_custom_call.1} parent=1 // pred_region
      %s16 = ssub.s32 128, 128
      %17 = vsyncadd [#allocation3], %s16
      %s19 = sshll.u32 [#allocation2], 4
      %s20 = int_to_ptr.vmem [resolvable:$true] %s19
      %22 = dma.hbm_to_vmem [thread:$0]  %s0, 128, %s20, [#allocation3]
    $region5: #{tpu_custom_call.1} parent=1 // pred_fallthru
      _
    // Predicated region
    $region6: #{tpu_custom_call.1} parent=1 // pred_check
      _
    $region7: #{tpu_custom_call.1} parent=1 // pred_check_branch
      %24 = sbr.rel (0) target = $region9
    $region8: #{tpu_custom_call.1} parent=1 // pred_region
      %s26 = ssub.s32 768, 768
      %27 = vsyncadd [#allocation6], %s26
      %s28 = sshll.u32 [#allocation5], 4
      %s29 = int_to_ptr.vmem [resolvable:$true] %s28
      %34 = dma.hbm_to_vmem [thread:$0]  %s1, 768, %s29, [#allocation6], 256, 256, 16
    $region9: #{tpu_custom_call.1} parent=1 // pred_fallthru
      _
    // Predicated region
    $region10: #{tpu_custom_call.1} parent=1 // pred_check
      _
    $region11: #{tpu_custom_call.1} parent=1 // pred_check_branch
      %36 = sbr.rel (0) target = $region13
    $region12: #{tpu_custom_call.1} parent=1 // pred_region
      _
    $region13: #{tpu_custom_call.1} parent=1 // pred_fallthru
      _
    // Predicated region
    $region14: #{tpu_custom_call.1} parent=1 // pred_check
      _
    $region15: #{tpu_custom_call.1} parent=1 // pred_check_branch
      %38 = sbr.rel (0) target = $region17
    $region16: #{tpu_custom_call.1} parent=1 // pred_region
      %s40 = ssub.s32 4096, 4096
      %41 = vsyncadd [#allocation6], %s40
      %s42 = sshll.u32 [#allocation7], 4
      %s43 = int_to_ptr.vmem [resolvable:$true] %s42
      %48 = dma.hbm_to_vmem [thread:$0]  %s3, 4096, %s43, [#allocation6], 128, 128, 8
    $region17: #{tpu_custom_call.1} parent=1 // pred_fallthru
      _
    // Predicated region
    $region18: #{tpu_custom_call.1} parent=1 // pred_check
      _
    $region19: #{tpu_custom_call.1} parent=1 // pred_check_branch
      %50 = sbr.rel (0) target = $region21
    $region20: #{tpu_custom_call.1} parent=1 // pred_region
      _
    $region21: #{tpu_custom_call.1} parent=1 // pred_fallthru
      _
    // Predicated region
    $region22: #{tpu_custom_call.1} parent=1 // pred_check
      _
    $region23: #{tpu_custom_call.1} parent=1 // pred_check_branch
      %52 = sbr.rel (0) target = $region25
    $region24: #{tpu_custom_call.1} parent=1 // pred_region
      %53 = dma.done [#allocation3], 128
    $region25: #{tpu_custom_call.1} parent=1 // pred_fallthru
      _
    // Predicated region
    $region26: #{tpu_custom_call.1} parent=1 // pred_check
      _
    $region27: #{tpu_custom_call.1} parent=1 // pred_check_branch
      %55 = sbr.rel (0) target = $region29
    $region28: #{tpu_custom_call.1} parent=1 // pred_region
      %56 = dma.done [#allocation6], 768
    $region29: #{tpu_custom_call.1} parent=1 // pred_fallthru
      _
    // Predicated region
    $region30: #{tpu_custom_call.1} parent=1 // pred_check
      _
    $region31: #{tpu_custom_call.1} parent=1 // pred_check_branch
      %58 = sbr.rel (0) target = $region33
    $region32: #{tpu_custom_call.1} parent=1 // pred_region
      %59 = dma.done [#allocation6], 4096
    $region33: #{tpu_custom_call.1} parent=1 // pred_fallthru
      _
    %v60 = vld [vmem:[#allocation2] sm:$0xff]
    %vm61 = vcmask 195584
    %v62 = vsel %vm61, %v60, 0.0
    %v63 = vrot.slane %v62, 4
    %v64 = vadd.f32 %v62, %v63
    %v65 = vrot.slane %v64, 2
    %v66 = vadd.f32 %v64, %v65
    %v67 = vrot.slane %v66, 1
    %v68 = vadd.f32 %v66, %v67
    %v69 = vmul.f32 %v60, %v60
    %v70 = vsel %vm61, %v69, 0.0
    %v71 = vrot.slane %v70, 4
    %v72 = vadd.f32 %v70, %v71
    %v73 = vrot.slane %v72, 2
    %v74 = vadd.f32 %v72, %v73
    %v75 = vrot.slane %v74, 1
    %v76 = vadd.f32 %v74, %v75
    %v77 = vmul.f32 %v68, 0.125
    %v78 = vmul.f32 %v76, 0.125
    %v79 = vmul.f32 %v77, %v77
    %v80 = vsub.f32 %v78, %v79
    %v81 = vmax.f32 %v80, 0.0
    %v82 = vsub.f32 %v60, %v77
    %v83 = vadd.f32 %v81, 1e-05
    %v84 = vrsqrt.pop %v83
    %v85 = vmul.f32 %v82, %v84
    %v86 = vld [vmem:[#allocation5] sm:$0xff]
    %v87 = vld [vmem:[#allocation5 + $0x8] sm:$0xff]
    %v88 = vld [vmem:[#allocation5 + $0x10] sm:$0xff]
    %v89 = vld [vmem:[#allocation5 + $0x18] sm:$0xff]
    %v90 = vld [vmem:[#allocation5 + $0x20] sm:$0xff]
    %v91 = vld [vmem:[#allocation5 + $0x28] sm:$0xff]
    %v92 = vld [vmem:[%s2] sm:$0x3]
    %v94 = vlaneseq
    %v95 = vshrl.u32 %v94, 7
    %v96 = vsub.s32 0, %v95
    %v97 = vrot.slane %v92, %v96
    %v98 = vlaneseq
    %v99 = vshrl.u32 %v98, 7
    %v100 = vsub.s32 1, %v99
    %v101 = vrot.slane %v92, %v100
    %v105 = vsel %vm61, %v85, 0
    %107 = vmatprep.subr.mxu0 %v87
    %108 = vmatpush1.msra.mxu0 %v86
    %109 = vmatprep.subr.mxu0 %v89
    %110 = vmatpush1.msra.mxu0 %v88
    %111 = vmatprep.subr.mxu0 %v91
    %112 = vmatpush1.msra.mxu0 %v90
    %113 = vmatprep.subr.mxu0 0.0
    %114 = vmatpush1.msra.mxu0 0.0
    %115 = vmatprep.subr.mxu0 0.0
    %116 = vmatpush1.msra.mxu0 0.0
    %117 = vmatprep.subr.mxu0 0.0
    %118 = vmatpush1.msra.mxu0 0.0
    %119 = vmatprep.subr.mxu0 0.0
    %120 = vmatpush1.msra.mxu0 0.0
    %121 = vmatprep.subr.mxu0 0.0
    %122 = vmatpush1.msra.mxu0 0.0
    %123 = vmatprep.subr.mxu0 0.0
    %124 = vmatpush1.msra.mxu0 0.0
    %125 = vmatprep.subr.mxu0 0.0
    %126 = vmatpush1.msra.mxu0 0.0
    %127 = vmatprep.subr.mxu0 0.0
    %128 = vmatpush1.msra.mxu0 0.0
    %129 = vmatprep.subr.mxu0 0.0
    %130 = vmatpush1.msra.mxu0 0.0
    %131 = vmatprep.subr.mxu0 0.0
    %132 = vmatpush1.msra.mxu0 0.0
    %133 = vmatprep.subr.mxu0 0.0
    %134 = vmatpush1.msra.mxu0 0.0
    %135 = vmatprep.subr.mxu0 0.0
    %136 = vmatpush1.msra.mxu0 0.0
    %137 = vmatprep.subr.mxu0 0.0
    %138 = vmatpush1.msra.mxu0 0.0
    %139 = vmatprep.subr.mxu0 0.0
    %140 = vmatpush1.msra.mxu0 0.0
    %141 = vmatprep.subr.mxu0 0.0
    %142 = vmatpush1.msra.mxu0 0.0
    %143 = vmatprep.subr.mxu0 0.0
    %144 = vmatpush1.msra.mxu0 0.0
    %145 = vmatprep.subr.mxu0 0.0
    %146 = vmatpush1.msra.mxu0 0.0
    %147 = vmatprep.subr.mxu0 0.0
    %148 = vmatpush1.msra.mxu0 0.0
    %149 = vmatprep.subr.mxu0 0.0
    %150 = vmatpush1.msra.mxu0 0.0
    %151 = vmatprep.subr.mxu0 0.0
    %152 = vmatpush1.msra.mxu0 0.0
    %153 = vmatprep.subr.mxu0 0.0
    %154 = vmatpush1.msra.mxu0 0.0
    %155 = vmatprep.subr.mxu0 0.0
    %156 = vmatpush1.msra.mxu0 0.0
    %157 = vmatprep.subr.mxu0 0.0
    %158 = vmatpush1.msra.mxu0 0.0
    %159 = vmatprep.subr.mxu0 0.0
    %160 = vmatpush1.msra.mxu0 0.0
    %161 = vmatprep.subr.mxu0 0.0
    %162 = vmatpush1.msra.mxu0 0.0
    %163 = vmatprep.subr.mxu0 0.0
    %164 = vmatpush1.msra.mxu0 0.0
    %165 = vmatprep.subr.mxu0 0.0
    %166 = vmatpush1.msra.mxu0 0.0
    %167 = vmatprep.subr.mxu0 0.0
    %168 = vmatpush1.msra.mxu0 0.0
    %169 = vmatprep.subr.mxu0 0.0
    %170 = vmatpush1.msra.mxu0 0.0
    %171 = vmatprep.mubr.f32.mxu0 0.0
    %172 = vmatmul.mubr.f32.gmra.mrb[0].mxu0 %v105
    %v173 = vpop.f32.mrb[0].mxu0
    %v174 = vadd.f32 %v97, %v173
    %v175 = vpop.f32.mrb[0].mxu0
    %v176 = vadd.f32 %v101, %v175
    %177 = vdwg.mxu0
    %v178 = vmax.f32 %v174, 0.0
    %v179 = vmax.f32 %v176, 0.0
    %v180 = vld [vmem:[#allocation7] sm:$0xff]
    %v181 = vld [vmem:[#allocation7 + $0x8] sm:$0xff]
    %v182 = vld [vmem:[#allocation7 + $0x10] sm:$0xff]
    %v183 = vld [vmem:[#allocation7 + $0x18] sm:$0xff]
    %v184 = vld [vmem:[#allocation7 + $0x20] sm:$0xff]
    %v185 = vld [vmem:[#allocation7 + $0x28] sm:$0xff]
    %v186 = vld [vmem:[#allocation7 + $0x30] sm:$0xff]
    %v187 = vld [vmem:[#allocation7 + $0x38] sm:$0xff]
    %v188 = vld [vmem:[#allocation7 + $0x40] sm:$0xff]
    %v189 = vld [vmem:[#allocation7 + $0x48] sm:$0xff]
    %v190 = vld [vmem:[#allocation7 + $0x50] sm:$0xff]
    %v191 = vld [vmem:[#allocation7 + $0x58] sm:$0xff]
    %v192 = vld [vmem:[#allocation7 + $0x60] sm:$0xff]
    %v193 = vld [vmem:[#allocation7 + $0x68] sm:$0xff]
    %v194 = vld [vmem:[#allocation7 + $0x70] sm:$0xff]
    %v195 = vld [vmem:[#allocation7 + $0x78] sm:$0xff]
    %v196 = vld [vmem:[#allocation7 + $0x80] sm:$0xff]
    %v197 = vld [vmem:[#allocation7 + $0x88] sm:$0xff]
    %v198 = vld [vmem:[#allocation7 + $0x90] sm:$0xff]
    %v199 = vld [vmem:[#allocation7 + $0x98] sm:$0xff]
    %v200 = vld [vmem:[#allocation7 + $0xa0] sm:$0xff]
    %v201 = vld [vmem:[#allocation7 + $0xa8] sm:$0xff]
    %v202 = vld [vmem:[#allocation7 + $0xb0] sm:$0xff]
    %v203 = vld [vmem:[#allocation7 + $0xb8] sm:$0xff]
    %v204 = vld [vmem:[#allocation7 + $0xc0] sm:$0xff]
    %v205 = vld [vmem:[#allocation7 + $0xc8] sm:$0xff]
    %v206 = vld [vmem:[#allocation7 + $0xd0] sm:$0xff]
    %v207 = vld [vmem:[#allocation7 + $0xd8] sm:$0xff]
    %v208 = vld [vmem:[#allocation7 + $0xe0] sm:$0xff]
    %v209 = vld [vmem:[#allocation7 + $0xe8] sm:$0xff]
    %v210 = vld [vmem:[#allocation7 + $0xf0] sm:$0xff]
    %v211 = vld [vmem:[#allocation7 + $0xf8] sm:$0xff]
    %v212 = vld [vmem:[%s4] sm:$0x1]
    %v214 = vlaneseq
    %v215 = vshrl.u32 %v214, 7
    %v216 = vsub.s32 0, %v215
    %v217 = vrot.slane %v212, %v216
    %219 = vmatprep.subr.mxu0 0.0
    %220 = vmatpush1.msra.mxu0 %v180
    %221 = vmatprep.subr.mxu0 0.0
    %222 = vmatpush1.msra.mxu0 %v181
    %223 = vmatprep.subr.mxu0 0.0
    %224 = vmatpush1.msra.mxu0 %v182
    %225 = vmatprep.subr.mxu0 0.0
    %226 = vmatpush1.msra.mxu0 %v183
    %227 = vmatprep.subr.mxu0 0.0
    %228 = vmatpush1.msra.mxu0 %v184
    %229 = vmatprep.subr.mxu0 0.0
    %230 = vmatpush1.msra.mxu0 %v185
    %231 = vmatprep.subr.mxu0 0.0
    %232 = vmatpush1.msra.mxu0 %v186
    %233 = vmatprep.subr.mxu0 0.0
    %234 = vmatpush1.msra.mxu0 %v187
    %235 = vmatprep.subr.mxu0 0.0
    %236 = vmatpush1.msra.mxu0 %v188
    %237 = vmatprep.subr.mxu0 0.0
    %238 = vmatpush1.msra.mxu0 %v189
    %239 = vmatprep.subr.mxu0 0.0
    %240 = vmatpush1.msra.mxu0 %v190
    %241 = vmatprep.subr.mxu0 0.0
    %242 = vmatpush1.msra.mxu0 %v191
    %243 = vmatprep.subr.mxu0 0.0
    %244 = vmatpush1.msra.mxu0 %v192
    %245 = vmatprep.subr.mxu0 0.0
    %246 = vmatpush1.msra.mxu0 %v193
    %247 = vmatprep.subr.mxu0 0.0
    %248 = vmatpush1.msra.mxu0 %v194
    %249 = vmatprep.subr.mxu0 0.0
    %250 = vmatpush1.msra.mxu0 %v195
    %251 = vmatprep.subr.mxu0 0.0
    %252 = vmatpush1.msra.mxu0 %v196
    %253 = vmatprep.subr.mxu0 0.0
    %254 = vmatpush1.msra.mxu0 %v197
    %255 = vmatprep.subr.mxu0 0.0
    %256 = vmatpush1.msra.mxu0 %v198
    %257 = vmatprep.subr.mxu0 0.0
    %258 = vmatpush1.msra.mxu0 %v199
    %259 = vmatprep.subr.mxu0 0.0
    %260 = vmatpush1.msra.mxu0 %v200
    %261 = vmatprep.subr.mxu0 0.0
    %262 = vmatpush1.msra.mxu0 %v201
    %263 = vmatprep.subr.mxu0 0.0
    %264 = vmatpush1.msra.mxu0 %v202
    %265 = vmatprep.subr.mxu0 0.0
    %266 = vmatpush1.msra.mxu0 %v203
    %267 = vmatprep.subr.mxu0 0.0
    %268 = vmatpush1.msra.mxu0 %v204
    %269 = vmatprep.subr.mxu0 0.0
    %270 = vmatpush1.msra.mxu0 %v205
    %271 = vmatprep.subr.mxu0 0.0
    %272 = vmatpush1.msra.mxu0 %v206
    %273 = vmatprep.subr.mxu0 0.0
    %274 = vmatpush1.msra.mxu0 %v207
    %275 = vmatprep.subr.mxu0 0.0
    %276 = vmatpush1.msra.mxu0 %v208
    %277 = vmatprep.subr.mxu0 0.0
    %278 = vmatpush1.msra.mxu0 %v209
    %279 = vmatprep.subr.mxu0 0.0
    %280 = vmatpush1.msra.mxu0 %v210
    %281 = vmatprep.subr.mxu0 0.0
    %282 = vmatpush1.msra.mxu0 %v211
    %283 = vmatprep.mubr.f32.mxu0 %v179
    %284 = vmatmul.mubr.f32.gmra.mrb[0].mxu0 %v178
    %v285 = vpop.f32.mrb[0].mxu0
    %v286 = vadd.f32 %v217, %v285
    %v287 = vpop.f32.mrb[0].mxu0
    %288 = vdwg.mxu0
    %v289 = vtanh.pop %v286
    %290 = vst [vmem:[#allocation8] sm:$0xff] %v289
    // Predicated region
    $region34: #{tpu_custom_call.1} parent=1 // pred_check
      _
    $region35: #{tpu_custom_call.1} parent=1 // pred_check_branch
      %292 = sbr.rel (0) target = $region37
    $region36: #{tpu_custom_call.1} parent=1 // pred_region
      %s294 = ssub.s32 128, 128
      %295 = vsyncadd [#allocation4], %s294
      %s297 = sshll.u32 [#allocation8], 4
      %s298 = int_to_ptr.vmem [resolvable:$true] %s297
      %300 = dma.vmem_to_hbm [thread:$0]  %s298, 128, %s5, [#allocation4]
    $region37: #{tpu_custom_call.1} parent=1 // pred_fallthru
      _
    // Predicated region
    $region38: #{tpu_custom_call.1} parent=1 // pred_check
      _
    $region39: #{tpu_custom_call.1} parent=1 // pred_check_branch
      %302 = sbr.rel (0) target = $region41
    $region40: #{tpu_custom_call.1} parent=1 // pred_region
      %303 = dma.done [#allocation4], 128
    $region41: #{tpu_custom_call.1} parent=1 // pred_fallthru
      _
    %304 = vsyncpa [#allocation3], 1
    %305 = vsyncpa [#allocation6], 1
    %306 = vsyncpa [#allocation4], 1

</llo_original>
